<compile_context>
chip_gen: v7x
topology: tpu7x:2x2x1
jax: 0.10.0
libtpu: 0.0.40
codegen_flags: <defaults>
</compile_context>

<pallas_src>
import jax
import jax.numpy as jnp
import numpy as np
from jax.experimental import pallas as pl
from jax.experimental.pallas import tpu as pltpu


_LANE = 128
_TARGET_BLOCK_BYTES = 2 * 1024 * 1024   # ~2 MiB per array per grid step
_VMEM_LIMIT_BYTES = 32 * 1024 * 1024    # safe on v5e/v6e/v7x, > v5e's 16 MiB default


def _copy_kernel(x_ref, o_ref):
    # Parity selection already happened in the index_map -> pure data movement.
    o_ref[...] = x_ref[...]


def _largest_divisor_at_most(n, limit):
    limit = max(1, min(n, limit))
    best = 1
    for d in range(1, limit + 1):
        if n % d == 0:
            best = d
    return best


def _pick_lane_block(w, h2, itemsize):
    # Largest multiple of 128 that divides W and keeps one (H//2, Wb) block
    # near the per-step byte target.
    n_lane_groups = w // _LANE
    max_groups = max(1, _TARGET_BLOCK_BYTES // (h2 * _LANE * itemsize))
    return _largest_divisor_at_most(n_lane_groups, max_groups) * _LANE


def _slice_pred_paired(image):
    """N even, W % 128 == 0: batched pure-copy kernel, parity in the index_map."""
    n, h, w = image.shape
    h2 = h // 2
    itemsize = np.dtype(image.dtype).itemsize
    num_pairs = n // 2

    wb = _pick_lane_block(w, h2, itemsize)
    n_wb = w // wb
    block_bytes = h2 * wb * itemsize
    bp = _largest_divisor_at_most(
        num_pairs, max(1, _TARGET_BLOCK_BYTES // max(1, block_bytes)))

    # (N, H, W) -> (num_pairs, 2, H//2, 2*W): frame 2c+f, row 2r+s lands at
    # [c, f, r, s*W:(s+1)*W]; even rows = lane half 0, odd rows = lane half 1.
    x2 = image.reshape(num_pairs, 2, h2, 2 * w)

    def in_index(c, f, j):
        # f == 0 -> even global frame index -> keep odd rows -> lane half 1.
        # f == 1 -> odd global frame index  -> keep even rows -> lane half 0.
        return (c, f, 0, (1 - f) * n_wb + j)

    def out_index(c, f, j):
        return (c, f, 0, j)

    out2 = pl.pallas_call(
        _copy_kernel,
        out_shape=jax.ShapeDtypeStruct((num_pairs, 2, h2, w), image.dtype),
        grid=(num_pairs // bp, 2, n_wb),
        in_specs=[pl.BlockSpec((bp, 1, h2, wb), in_index)],
        out_specs=pl.BlockSpec((bp, 1, h2, wb), out_index),
        compiler_params=pltpu.CompilerParams(
            dimension_semantics=("parallel", "parallel", "parallel"),
            vmem_limit_bytes=_VMEM_LIMIT_BYTES),
    )(x2)
    return out2.reshape(n, h2, w)


def _slice_pred_per_frame(image):
    """Any N, W % 128 == 0: per-frame pure-copy kernel, parity in the index_map."""
    n, h, w = image.shape
    h2 = h // 2
    itemsize = np.dtype(image.dtype).itemsize
    wb = _pick_lane_block(w, h2, itemsize)
    n_wb = w // wb

    x2 = image.reshape(n, h2, 2 * w)

    def in_index(i, j):
        # even frame -> lane half 1 (odd rows); odd frame -> lane half 0.
        return (i, 0, ((i + 1) % 2) * n_wb + j)

    def out_index(i, j):
        return (i, 0, j)

    return pl.pallas_call(
        _copy_kernel,
        out_shape=jax.ShapeDtypeStruct((n, h2, w), image.dtype),
        grid=(n, n_wb),
        in_specs=[pl.BlockSpec((1, h2, wb), in_index)],
        out_specs=pl.BlockSpec((1, h2, wb), out_index),
        compiler_params=pltpu.CompilerParams(
            dimension_semantics=("parallel", "parallel"),
            vmem_limit_bytes=_VMEM_LIMIT_BYTES),
    )(x2)


def _slice_pred_fallback(image):
    """W not a multiple of 128: full-frame block, one strided slice per frame."""
    n, h, w = image.shape
    h2 = h // 2

    def kernel(x_ref, o_ref):
        i = pl.program_id(0)
        x = x_ref[0]                      # (H, W), already in VMEM

        @pl.when(i % 2 == 0)
        def _():
            o_ref[0] = x[1::2, :]         # even frame index -> odd rows

        @pl.when(i % 2 == 1)
        def _():
            o_ref[0] = x[0::2, :]         # odd frame index -> even rows

    return pl.pallas_call(
        kernel,
        out_shape=jax.ShapeDtypeStruct((n, h2, w), image.dtype),
        grid=(n,),
        in_specs=[pl.BlockSpec((1, h, w), lambda i: (i, 0, 0))],
        out_specs=pl.BlockSpec((1, h2, w), lambda i: (i, 0, 0)),
        compiler_params=pltpu.CompilerParams(
            dimension_semantics=("parallel",),
            vmem_limit_bytes=_VMEM_LIMIT_BYTES),
    )(image)


def slice_pred(image: jax.Array) -> jax.Array:
    """image: (N, H, W) with H even. Returns the stacked result (N, H//2, W)."""
    n, h, w = image.shape
    # TODO(synk): odd H would give ragged per-frame shapes (H//2 vs (H+1)//2);
    # not representable as a single stacked output, so it is unsupported here.
    assert h % 2 == 0, "H must be even"
    if w % _LANE == 0 and n >= 2 and n % 2 == 0:
        return _slice_pred_paired(image)
    if w % _LANE == 0:
        return _slice_pred_per_frame(image)
    return _slice_pred_fallback(image)


def slice_pred_frames(image: jax.Array):
    """Strict PyTorch container parity (list of frames). Glue only; prefer the
    stacked output of slice_pred() to avoid per-frame dispatch overhead."""
    return list(slice_pred(image))


if __name__ == "__main__":
    key = jax.random.PRNGKey(0)

    def _check(image):
        out = jax.block_until_ready(slice_pred(image))
        img_np = np.asarray(image)
        for i in range(image.shape[0]):
            expected = img_np[i][1::2, :] if i % 2 == 0 else img_np[i][0::2, :]
            np.testing.assert_allclose(np.asarray(out[i]), expected, rtol=0, atol=0)

    k1, k2, k3 = jax.random.split(key, 3)
    # Primary path: even N, lane-aligned W -> paired, batched pure-copy kernel.
    _check(jax.random.normal(k1, (4, 16, 256), dtype=jnp.float32))
    # Odd N, lane-aligned W -> per-frame pure-copy kernel.
    _check(jax.random.normal(k2, (5, 16, 128), dtype=jnp.float32))
    # W not a multiple of 128 -> fallback kernel (pl.when + single strided slice).
    _check(jax.random.normal(k3, (3, 8, 192), dtype=jnp.float32))

    print("KERNEL_OK")
</pallas_src>

<mosaic_0001>
module attributes {stable_mosaic.version = 11 : i64} {
  func.func @_copy_kernel(%arg0: i32, %arg1: i32, %arg2: i32, %arg3: memref<2x1x8x256xf32, #tpu.memory_space<vmem>>, %arg4: memref<2x1x8x256xf32, #tpu.memory_space<vmem>>) attributes {dimension_semantics = [#tpu.dimension_semantics<parallel>, #tpu.dimension_semantics<parallel>, #tpu.dimension_semantics<parallel>], iteration_bounds = array<i64: 1, 2, 1>, scalar_prefetch = 0 : i64, scratch_operands = 0 : i64, tpu.core_type = #tpu.core_type<tc>, window_params = [{transform_indices = @transform_0, window_bounds = array<i64: 2, 1, 8, 256>}, {transform_indices = @transform_1, window_bounds = array<i64: 2, 1, 8, 256>}]} {
    %c0 = arith.constant 0 : index
    %c0_0 = arith.constant 0 : index
    %c0_1 = arith.constant 0 : index
    %c0_2 = arith.constant 0 : index
    %0 = vector.load %arg3[%c0, %c0_0, %c0_1, %c0_2] : memref<2x1x8x256xf32, #tpu.memory_space<vmem>>, vector<2x1x8x256xf32>
    %c0_3 = arith.constant 0 : index
    %c0_4 = arith.constant 0 : index
    %c0_5 = arith.constant 0 : index
    %c0_6 = arith.constant 0 : index
    %1 = vector.load %arg4[%c0_3, %c0_4, %c0_5, %c0_6] : memref<2x1x8x256xf32, #tpu.memory_space<vmem>>, vector<2x1x8x256xf32>
    tpu.vector_store %arg4[%c0_3, %c0_4, %c0_5, %c0_6], %0 {strides = array<i32>} : memref<2x1x8x256xf32, #tpu.memory_space<vmem>>, vector<2x1x8x256xf32>,
    return
  }
  func.func @transform_0(%arg0: i32, %arg1: i32, %arg2: i32) -> (i32, i32, i32, i32) {
    %c1_i32 = arith.constant 1 : i32
    %0 = arith.subi %c1_i32, %arg1 : i32
    %c1_i32_0 = arith.constant 1 : i32
    %1 = arith.muli %0, %c1_i32_0 : i32
    %2 = arith.addi %1, %arg2 : i32
    %c0_i32 = arith.constant 0 : i32
    %c0_i32_1 = arith.constant 0 : i32
    return %arg0, %arg1, %c0_i32, %2 : i32, i32, i32, i32
  }
  func.func @transform_1(%arg0: i32, %arg1: i32, %arg2: i32) -> (i32, i32, i32, i32) {
    %c0_i32 = arith.constant 0 : i32
    %c0_i32_0 = arith.constant 0 : i32
    return %arg0, %arg1, %c0_i32, %arg2 : i32, i32, i32, i32
  }
}

</mosaic_0001>

<llo_original>
// kernel: tpu_custom_call.1
$region0: #{tpu_custom_call.1}
  #allocation0 [shape = 'u32[]', space=smem, size = 0x4, offset = 0x4, fixed_abs, tag = 'smem constant byte address 0x4 - core index']
  #allocation1 [shape = 'u32[144,128]{1,0:T(1,128)}', space=vmem, size = 0x12000, scoped, tag = 'internal scratch']
  %s0 = inlined_call_operand.hbm [shape: f32[2,2,8,512], index: 0, kind: input, shape index: {}]
  %s1 = inlined_call_operand.hbm [shape: f32[2,2,8,256], index: 1, kind: output, shape index: {}]
  %s2 = sld [smem:[#allocation0]]
  $region41: #{tpu_custom_call.1} parent=0
    _
  %s4 = ssub.s32 1, %s2
  %s5 = scalar_select 0, %s4, %s2
  $region1: #{tpu_custom_call.1} parent=0
    #allocation2 [shape = 'u8[32768]{0}', space=vmem, size = 0x8000, scoped, tag = 'input window, operand 0']
    #allocation3 [shape = 's32[2]{0}', space=sflag, size = 0x8, scoped, tag = 'scoped memory for tpu_custom_call.1']
    #allocation4 [shape = 's32[2]{0}', space=sflag, size = 0x8, scoped, tag = 'scoped memory for tpu_custom_call.1']
    #allocation5 [shape = 'u8[32768]{0}', space=vmem, size = 0x8000, scoped, tag = 'output window, operand 0']
    %6 = vsyncpa [#allocation3], 0
    %s7 = scalar_lea.sflag [#allocation3], 1
    %8 = vsyncpa %s7, 0
    %9 = vsyncpa [#allocation4], 0
    %s10 = scalar_lea.sflag [#allocation4], 1
    %11 = vsyncpa %s10, 0
    loop: start=0, step=1, limit=4
    $region2: #{tpu_custom_call.1} parent=1 // loop_pre_header
      _
    $region3: #{tpu_custom_call.1} parent=1 // loop_header
      %s13 = sphi 0, %s17
      %p14 = scmp.ge.s32.totalorder %s13, 4
      %s20 = sphi 0, %s39
      %s21 = sphi 0, %s35
      %s22 = sphi 0, %s31
      %s23 = sphi 0, %s20
      %s24 = sphi 0, %s21
      %s25 = sphi 0, %s22
      %s26 = sphi 0, %s23
      %s27 = sphi 0, %s24
      %s28 = sphi 0, %s25
      %s50 = sphi 0, %s52
      %s53 = sphi 0, %s50
      %s54 = sphi 0, %s53
      %s70 = sphi 0, %s54
      %s80 = sphi 0, %s82
      %s83 = sphi 0, %s80
      %s84 = sphi 0, %s83
      %s100 = sphi 0, %s84
    $region4: #{tpu_custom_call.1} parent=1 // loop_header_branch
      %16 = sbr.rel (%p14) target = $region8
    $region5: #{tpu_custom_call.1} parent=1 // loop_body
      %s18 = ssub.s32 %s13, 1
      %s19 = ssub.s32 %s13, 2
      %s29 = sadd.s32 1, %s22
      %p30 = scmp.ge.s32.totalorder %s29, 1
      %s31 = scalar_select %p30, 0, %s29
      %s32 = sadd.s32 1, %s21
      %s33 = scalar_select %p30, %s32, %s21
      %p34 = scmp.ge.s32.totalorder %s33, 2
      %s35 = scalar_select %p34, 0, %s33
      %s36 = sadd.s32 1, %s20
      %s37 = scalar_select %p34, %s36, %s20
      %p38 = scmp.ge.s32.totalorder %s37, 1
      %s39 = scalar_select %p38, 0, %s37
      %s40 = ssub.s32 1, %s21
      %s41 = sadd.s32 %s40, %s22
      %s42 = ssub.s32 1, %s35
      %s43 = sadd.s32 %s42, %s31
      %s44 = ssub.s32 %s20, %s39
      %s45 = ssub.s32 %s21, %s35
      %s46 = sor.u32 %s44, %s45
      %s47 = ssub.s32 %s41, %s43
      %s48 = sor.u32 %s46, %s47
      %p49 = scmp.eq.s32.totalorder %s48, 0
      %s51 = sadd.s32 %s50, 1
      %s52 = scalar_select %p49, %s50, %s51
      %p55 = pneg %p49
      %p56 = scmp.eq.s32.totalorder %s13, 1
      %p57 = por %p55, %p56
      %p58 = scmp.ne.s32.totalorder %s50, %s53
      %p59 = scmp.eq.s32.totalorder %s13, 0
      %p60 = por %p58, %p59
      %p61 = scmp.ne.s32.totalorder %s50, %s53
      %p62 = scmp.eq.s32.totalorder %s18, 1
      %p63 = por %p61, %p62
      %p64 = scmp.ne.s32.totalorder %s53, %s54
      %p65 = scmp.eq.s32.totalorder %s18, 0
      %p66 = por %p64, %p65
      %p67 = scmp.ne.s32.totalorder %s53, %s54
      %p68 = scmp.eq.s32.totalorder %s19, 1
      %p69 = por %p67, %p68
      %p71 = scmp.ne.s32.totalorder %s54, %s70
      %p72 = scmp.eq.s32.totalorder %s19, 0
      %p73 = por %p71, %p72
      %s74 = ssub.s32 %s20, %s39
      %s75 = ssub.s32 %s21, %s35
      %s76 = sor.u32 %s74, %s75
      %s77 = ssub.s32 %s22, %s31
      %s78 = sor.u32 %s76, %s77
      %p79 = scmp.eq.s32.totalorder %s78, 0
      %s81 = sadd.s32 %s80, 1
      %s82 = scalar_select %p79, %s80, %s81
      %p85 = pneg %p79
      %p86 = scmp.eq.s32.totalorder %s13, 1
      %p87 = por %p85, %p86
      %p88 = scmp.ne.s32.totalorder %s80, %s83
      %p89 = scmp.eq.s32.totalorder %s13, 0
      %p90 = por %p88, %p89
      %p91 = scmp.ne.s32.totalorder %s80, %s83
      %p92 = scmp.eq.s32.totalorder %s18, 1
      %p93 = por %p91, %p92
      %p94 = scmp.ne.s32.totalorder %s83, %s84
      %p95 = scmp.eq.s32.totalorder %s18, 0
      %p96 = por %p94, %p95
      %p97 = scmp.ne.s32.totalorder %s83, %s84
      %p98 = scmp.eq.s32.totalorder %s19, 1
      %p99 = por %p97, %p98
      %p101 = scmp.ne.s32.totalorder %s84, %s100
      %p102 = scmp.eq.s32.totalorder %s19, 0
      %p103 = por %p101, %p102
      %p104 = scmp.le.s32.totalorder 1, %s13
      %p105 = scmp.lt.s32.totalorder %s13, 3
      %p106 = pnand %p104, %p105
      %p107 = pneg %p106
      // Predicated region
      $region9: #{tpu_custom_call.1} parent=5 // pred_check
        _
      $region10: #{tpu_custom_call.1} parent=5 // pred_check_branch
        %109 = sbr.rel (%p106) target = $region12
      $region11: #{tpu_custom_call.1} parent=5 // pred_region
        %s110 = ssub.s32 %s13, 1
      $region12: #{tpu_custom_call.1} parent=5 // pred_fallthru
        _
      %p111 = scmp.lt.s32.totalorder %s13, 2
      // Predicated region
      $region13: #{tpu_custom_call.1} parent=5 // pred_check
        %p112 = pneg %p111
      $region14: #{tpu_custom_call.1} parent=5 // pred_check_branch
        %114 = sbr.rel (%p112) target = $region16
      $region15: #{tpu_custom_call.1} parent=5 // pred_region
        // Predicated region
        $region17: #{tpu_custom_call.1} parent=15 // pred_check
          %p115 = pneg %p60
        $region18: #{tpu_custom_call.1} parent=15 // pred_check_branch
          %117 = sbr.rel (%p115) target = $region20
        $region19: #{tpu_custom_call.1} parent=15 // pred_region
          %s118 = sand.u32 %s50, 1
          %s119 = scalar_lea.sflag [#allocation3], %s118
          %s120 = sand.u32 %s50, 1
          %s121 = smul.addr %s120, 32
          %s122 = scalar_lea.vmem [#allocation2], %s121
          %s123 = ssub.s32 1, %s21
          %s124 = sadd.s32 %s123, %s22
          %s125 = smul.u32 2, %s20
          %s126 = smul.u32 2, %s124
          %s128 = ssub.s32 512, 512
          %129 = vsyncadd %s119, %s128
          %s130 = smul.addr %s21, 4
          %s131 = sadd.s32 %s126, %s130
          %s132 = smul.addr %s125, 8
          %s133 = sadd.s32 %s131, %s132
          %s134 = smul.addr %s133, 128
          %s135 = scalar_lea.hbm %s0, %s134
          %s136 = sshll.u32 %s122, 4
          %s137 = int_to_ptr.vmem [resolvable:$true] %s136
          %142 = dma.hbm_to_vmem [thread:$0]  %s135, 512, %s137, %s119, 1024, 256, 16
        $region20: #{tpu_custom_call.1} parent=15 // pred_fallthru
          _
      $region16: #{tpu_custom_call.1} parent=5 // pred_fallthru
        _
      %p143 = scmp.le.s32.totalorder 1, %s13
      %p144 = scmp.lt.s32.totalorder %s13, 3
      %p145 = pnand %p143, %p144
      %p146 = pneg %p145
      // Predicated region
      $region21: #{tpu_custom_call.1} parent=5 // pred_check
        _
      $region22: #{tpu_custom_call.1} parent=5 // pred_check_branch
        %148 = sbr.rel (%p145) target = $region24
      $region23: #{tpu_custom_call.1} parent=5 // pred_region
        %s149 = ssub.s32 %s13, 1
        %s150 = sand.u32 %s53, 1
        %s151 = scalar_lea.sflag [#allocation3], %s150
        %s152 = sand.u32 %s53, 1
        %s153 = smul.addr %s152, 32
        %s154 = scalar_lea.vmem [#allocation2], %s153
        // Predicated region
        $region25: #{tpu_custom_call.1} parent=23 // pred_check
          %p155 = pneg %p66
        $region26: #{tpu_custom_call.1} parent=23 // pred_check_branch
          %157 = sbr.rel (%p155) target = $region28
        $region27: #{tpu_custom_call.1} parent=23 // pred_region
          %158 = dma.done %s151, 512
        $region28: #{tpu_custom_call.1} parent=23 // pred_fallthru
          _
        %s159 = sand.u32 %s53, 1
        %s160 = scalar_lea.sflag [#allocation3], %s159
        %s161 = sand.u32 %s53, 1
        %s162 = smul.addr %s161, 32
        %s163 = scalar_lea.vmem [#allocation2], %s162
        %p164 = pneg %p66
        %p165 = pneg %p63
        %p166 = pneg %p96
        %p167 = pneg %p93
        %s168 = sand.u32 %s83, 1
        %s169 = scalar_lea.sflag [#allocation4], %s168
        %s170 = sand.u32 %s83, 1
        %s171 = smul.addr %s170, 32
        %s172 = scalar_lea.vmem [#allocation5], %s171
        %s173 = ssub.s32 1, %s24
        %s174 = sadd.s32 %s173, %s25
        %s175 = smul.u32 2, %s23
        %s176 = smul.u32 2, %s174
        %s177 = smul.u32 2, %s23
        %s178 = smul.u32 2, %s25
        %v179 = vld [vmem:[%s154] sm:$0xff]
        %v180 = vld [vmem:[%s154 + $0x8] sm:$0xff]
        %v181 = vld [vmem:[%s154 + $0x10] sm:$0xff]
        %v182 = vld [vmem:[%s154 + $0x18] sm:$0xff]
        %183 = vst [vmem:[%s172] sm:$0xff] %v179
        %184 = vst [vmem:[%s172 + $0x8] sm:$0xff] %v180
        %185 = vst [vmem:[%s172 + $0x10] sm:$0xff] %v181
        %186 = vst [vmem:[%s172 + $0x18] sm:$0xff] %v182
        %s187 = sand.u32 %s83, 1
        %s188 = scalar_lea.sflag [#allocation4], %s187
        %s189 = sand.u32 %s83, 1
        %s190 = smul.addr %s189, 32
        %s191 = scalar_lea.vmem [#allocation5], %s190
        // Predicated region
        $region29: #{tpu_custom_call.1} parent=23 // pred_check
          %p192 = pneg %p93
        $region30: #{tpu_custom_call.1} parent=23 // pred_check_branch
          %194 = sbr.rel (%p192) target = $region32
        $region31: #{tpu_custom_call.1} parent=23 // pred_region
          %s195 = smul.u32 2, %s23
          %s196 = smul.u32 2, %s25
          %s198 = ssub.s32 512, 512
          %199 = vsyncadd %s188, %s198
          %s200 = smul.addr %s24, 2
          %s201 = sadd.s32 %s196, %s200
          %s202 = smul.addr %s195, 4
          %s203 = sadd.s32 %s201, %s202
          %s204 = smul.addr %s203, 128
          %s205 = scalar_lea.hbm %s1, %s204
          %s206 = sshll.u32 %s191, 4
          %s207 = int_to_ptr.vmem [resolvable:$true] %s206
          %212 = dma.vmem_to_hbm [thread:$0]  %s207, 512, %s205, %s188, 256, 512, 16
        $region32: #{tpu_custom_call.1} parent=23 // pred_fallthru
          _
      $region24: #{tpu_custom_call.1} parent=5 // pred_fallthru
        _
      %p213 = scmp.le.s32.totalorder 2, %s13
      // Predicated region
      $region33: #{tpu_custom_call.1} parent=5 // pred_check
        %p214 = pneg %p213
      $region34: #{tpu_custom_call.1} parent=5 // pred_check_branch
        %216 = sbr.rel (%p214) target = $region36
      $region35: #{tpu_custom_call.1} parent=5 // pred_region
        %s217 = ssub.s32 %s13, 2
        // Predicated region
        $region37: #{tpu_custom_call.1} parent=35 // pred_check
          %p218 = pneg %p99
        $region38: #{tpu_custom_call.1} parent=35 // pred_check_branch
          %220 = sbr.rel (%p218) target = $region40
        $region39: #{tpu_custom_call.1} parent=35 // pred_region
          %s221 = sand.u32 %s84, 1
          %s222 = scalar_lea.sflag [#allocation4], %s221
          %s223 = sand.u32 %s84, 1
          %s224 = smul.addr %s223, 32
          %s225 = scalar_lea.vmem [#allocation5], %s224
          %226 = dma.done %s222, 512
        $region40: #{tpu_custom_call.1} parent=35 // pred_fallthru
          _
      $region36: #{tpu_custom_call.1} parent=5 // pred_fallthru
        _
    $region6: #{tpu_custom_call.1} parent=1 // loop_footer
      %s17 = sadd.s32 1, %s13
    $region7: #{tpu_custom_call.1} parent=1 // loop_footer_branch
      %12 = sbr.rel target = $region3
    $region8: #{tpu_custom_call.1} parent=1 // loop_exit
      _
    %227 = vsyncpa [#allocation3], 1
    %s228 = scalar_lea.sflag [#allocation3], 1
    %229 = vsyncpa %s228, 1
    %230 = vsyncpa [#allocation4], 1
    %s231 = scalar_lea.sflag [#allocation4], 1
    %232 = vsyncpa %s231, 1

</llo_original>
